<compile_context>
chip_gen: v6e
topology: v6e:2x2x1
jax: 0.10.0
libtpu: 0.0.40
codegen_flags: <defaults>
</compile_context>

<pallas_src>
import jax
import jax.numpy as jnp
from jax import lax
from jax.experimental import pallas as pl
from jax.experimental.pallas import tpu as pltpu


_LANES = 128
_SUBLANES = 8
_MAX_TILE_M = 8192            # (8192, 128) f32 block = 4 MiB; 8 MiB double-buffered
_CHUNK_M = 128                # rows per inner-loop step (16 live f32 vregs)
_MAX_PARALLEL = 2             # at most 2 TensorCores per chip (v7x megacore)
_VMEM_LIMIT_BYTES = 32 * 1024 * 1024


def _cdiv(a, b):
    return -(-a // b)


def _round_up(a, m):
    return _cdiv(a, m) * m


_NUM_CORES_CACHE = None


def _num_parallel_cores():
    """Best-effort TensorCore count (1 on v5e/v6e, 2 on megacore chips)."""
    global _NUM_CORES_CACHE
    if _NUM_CORES_CACHE is None:
        n = 1
        try:
            dev = jax.devices()[0]
            if getattr(dev, "platform", "") == "tpu":
                attr = getattr(dev, "num_cores", None)
                if isinstance(attr, int) and attr > 0:
                    n = attr
        except Exception:
            n = 1
        _NUM_CORES_CACHE = max(1, min(_MAX_PARALLEL, n))
    return _NUM_CORES_CACHE


def _fold_rows_to_8(v):
    """(m, 128) f32 with m % 8 == 0  ->  (8, 128) sum of the 8-row groups.

    Pairwise tree of vreg-aligned slices: pure VPU adds, no XLU, short dep chain.
    """
    m = v.shape[0]
    parts = [v[i * 8:(i + 1) * 8, :] for i in range(m // 8)]
    while len(parts) > 1:
        nxt = []
        for j in range(0, len(parts) - 1, 2):
            nxt.append(parts[j] + parts[j + 1])
        if len(parts) % 2:
            nxt.append(parts[-1])
        parts = nxt
    return parts[0]


def _make_l1l2_kernel(tile_m, chunk, rows, steps, needs_mask):
    """Kernel computing per-core (8,128) partial sums of |x| and x**2."""
    n_full = tile_m // chunk
    tail = tile_m % chunk          # static; multiple of the dtype row alignment

    def chunk_sums(x_ref, off, nrows, limit0):
        # limit0: None (no masking) or scalar int32 = #valid rows in this tile;
        # tile-local rows >= limit0 are zeroed BEFORE abs/square (garbage-safe).
        xc = x_ref[pl.ds(off, nrows), :].astype(jnp.float32)
        if limit0 is not None:
            ridx = lax.broadcasted_iota(jnp.int32, (nrows, _LANES), 0)
            xc = jnp.where(ridx < (limit0 - off), xc, 0.0)
        return _fold_rows_to_8(jnp.abs(xc)), _fold_rows_to_8(xc * xc)

    def accumulate(x_ref, l1_ref, l2_ref, limit0):
        zero = jnp.zeros((_SUBLANES, _LANES), jnp.float32)
        a1, a2 = zero, zero
        if n_full == 1:
            d1, d2 = chunk_sums(x_ref, 0, chunk, limit0)
            a1, a2 = a1 + d1, a2 + d2
        elif n_full > 1:
            def body(c, carry):
                b1, b2 = carry
                off = pl.multiple_of(c * chunk, chunk)
                d1, d2 = chunk_sums(x_ref, off, chunk, limit0)
                return b1 + d1, b2 + d2
            a1, a2 = lax.fori_loop(0, n_full, body, (a1, a2))
        if tail:
            d1, d2 = chunk_sums(x_ref, n_full * chunk, tail, limit0)
            a1, a2 = a1 + d1, a2 + d2
        l1_ref[...] += a1
        l2_ref[...] += a2

    def kernel(x_ref, l1_ref, l2_ref):
        p = pl.program_id(0)     # parallel (core-split) axis
        k = pl.program_id(1)     # sequential reduction axis

        @pl.when(k == 0)
        def _():
            l1_ref[...] = jnp.zeros_like(l1_ref)
            l2_ref[...] = jnp.zeros_like(l2_ref)

        if needs_mask:
            # In-bounds rows for this logical tile; <= 0 for the duplicated
            # overhang tiles produced by the clamped index_map.
            valid = rows - (p * steps + k) * tile_m

            @pl.when(valid >= tile_m)          # full tile: pure abs/mul/add
            def _():
                accumulate(x_ref, l1_ref, l2_ref, None)

            @pl.when(valid < tile_m)           # partial / empty tile: masked
            def _():
                accumulate(x_ref, l1_ref, l2_ref, valid)
        else:
            accumulate(x_ref, l1_ref, l2_ref, None)

    return kernel


def _pallas_l1l2(x2d):
    """One pass over x2d (rows, 128): returns (sum|x|, sum x**2) as f32 scalars."""
    rows = x2d.shape[0]
    dtype = jnp.dtype(x2d.dtype)

    tile_m = min(_MAX_TILE_M, rows)
    total_tiles = _cdiv(rows, tile_m)

    cores = _num_parallel_cores()
    n_par = cores if (cores > 1 and total_tiles >= 2 * cores) else 1
    steps = _cdiv(total_tiles, n_par)
    needs_mask = (total_tiles * tile_m != rows) or (n_par * steps != total_tiles)

    chunk = min(_CHUNK_M, tile_m)
    kernel = _make_l1l2_kernel(tile_m, chunk, rows, steps, needs_mask)

    n_elems = rows * _LANES
    cost = pl.CostEstimate(
        flops=4 * n_elems,
        transcendentals=0,
        bytes_accessed=n_elems * dtype.itemsize
        + 2 * n_par * _SUBLANES * _LANES * 4,
    )

    l1_parts, l2_parts = pl.pallas_call(
        kernel,
        out_shape=(
            jax.ShapeDtypeStruct((_SUBLANES, n_par * _LANES), jnp.float32),
            jax.ShapeDtypeStruct((_SUBLANES, n_par * _LANES), jnp.float32),
        ),
        grid_spec=pltpu.PrefetchScalarGridSpec(
            num_scalar_prefetch=0,
            grid=(n_par, steps),
            in_specs=[pl.BlockSpec(
                (tile_m, _LANES),
                # Clamp overhang tiles into range; they are fully masked in-kernel.
                lambda p, k: (jnp.minimum(p * steps + k, total_tiles - 1), 0))],
            out_specs=(
                pl.BlockSpec((_SUBLANES, _LANES), lambda p, k: (0, p)),
                pl.BlockSpec((_SUBLANES, _LANES), lambda p, k: (0, p)),
            ),
        ),
        compiler_params=pltpu.CompilerParams(
            dimension_semantics=("parallel", "arbitrary"),
            vmem_limit_bytes=_VMEM_LIMIT_BYTES,
        ),
        cost_estimate=cost,
    )(x2d)

    # Tiny final cross-lane / cross-core reduction in plain JAX.
    return jnp.sum(l1_parts), jnp.sum(l2_parts)


def _reg_sums_tensors(tensors):
    """(sum|x|, sum x**2) over all tensors; one Pallas pass per dtype group."""
    groups = {}
    for t in tensors:
        groups.setdefault(jnp.dtype(t.dtype), []).append(t.reshape(-1))

    l1_tot = jnp.float32(0.0)
    l2_tot = jnp.float32(0.0)
    for dtype, flats in groups.items():
        n = sum(int(f.shape[0]) for f in flats)
        # Align the streamed block to the dtype's native (packing*8, 128) tile.
        packing = max(1, 4 // dtype.itemsize)
        row_align = _SUBLANES * packing
        n_pad = _round_up(max(n, 1), row_align * _LANES)
        if n_pad != n:
            flats = flats + [jnp.zeros((n_pad - n,), dtype)]   # zeros contribute 0
        flat = flats[0] if len(flats) == 1 else jnp.concatenate(flats)
        x2d = flat.reshape(n_pad // _LANES, _LANES)            # free reshape
        l1, l2 = _pallas_l1l2(x2d)
        l1_tot = l1_tot + l1
        l2_tot = l2_tot + l2
    return l1_tot, l2_tot


@jax.jit
def _regular_forward(tensors, c_l1, c_l2):
    l1, l2 = _reg_sums_tensors(tensors)
    return c_l1 * l1 + c_l2 * l2


# ----------------------------------------------------------------------------
# Wrapper mirroring Regular.forward / Regular._compute_reg
# ----------------------------------------------------------------------------
class RegularPallas:
    """JAX/Pallas equivalent of `Regular`.

    cfg: dict  regular_name -> {"model": "L1"|"L2", "reg_coefficient": float}
    """

    def __init__(self, cfg):
        self.regular_names = list(cfg.keys())
        self.reg_coefficient = {k: cfg[k]["reg_coefficient"] for k in cfg}
        self.model_kind = {k: cfg[k]["model"] for k in cfg}

    def __call__(self, inp):
        if isinstance(inp, (list, tuple)):
            tensors = [jnp.asarray(t) for t in inp]
        elif hasattr(inp, "shape") and hasattr(inp, "dtype"):
            tensors = [jnp.asarray(inp)]
        else:
            raise Exception("input data type error!")

        # reg = sum_k coeff_k * model_k(input); same-kind keys fold into one
        # combined coefficient so each tensor is streamed exactly once.
        c_l1 = 0.0
        c_l2 = 0.0
        for key in self.regular_names:
            kind = self.model_kind[key]
            coeff = self.reg_coefficient[key]
            if kind == "L1":
                c_l1 += coeff
            elif kind == "L2":
                c_l2 += coeff
            else:
                # TODO(synk): model=None (nn.Identity) returns the tensor itself, not a
                # scalar loss; there is no meaningful scalar-reduction kernel for it.
                raise ValueError(f"unsupported regularizer kind: {kind}")

        return _regular_forward(tuple(tensors), jnp.float32(c_l1), jnp.float32(c_l2))


if __name__ == "__main__":
    # Deterministic config (stand-in for the Hydra/yaml cfg of the torch code)
    cfg = {
        "l1_reg": {"model": "L1", "reg_coefficient": 0.01},
        "l2_reg": {"model": "L2", "reg_coefficient": 0.001},
    }
    regular = RegularPallas(cfg)

    key = jax.random.PRNGKey(0)
    k1, k2, k3 = jax.random.split(key, 3)
    # Small NCHW inputs (single-tile path) plus a list input.
    x = jax.random.normal(k1, (2, 4, 16, 16), dtype=jnp.float32)
    y = jax.random.normal(k2, (2, 4, 16, 16), dtype=jnp.float32)
    # Moderately sized tensor: exercises multi-tile + partial-tile (masked) path
    # and the concatenate/pad path.
    z = jax.random.normal(k3, (1030, 1030), dtype=jnp.float32)

    out_single = regular(x)
    out_list = regular([x, y])
    out_big = regular([x, z])
    jax.block_until_ready(out_single)
    jax.block_until_ready(out_list)
    jax.block_until_ready(out_big)

    # Pure-JAX reference check.
    def ref(inp):
        if not isinstance(inp, (list, tuple)):
            inp = [inp]
        r = jnp.float32(0.0)
        for t in inp:
            r = r + 0.01 * jnp.sum(jnp.abs(t)) + 0.001 * jnp.sum(t * t)
        return r

    assert jnp.allclose(out_single, ref(x), rtol=1e-4, atol=1e-4)
    assert jnp.allclose(out_list, ref([x, y]), rtol=1e-4, atol=1e-4)
    assert jnp.allclose(out_big, ref([x, z]), rtol=1e-4, atol=1e-4)

    print("KERNEL_OK")
</pallas_src>

<mosaic_0001>
module attributes {stable_mosaic.version = 11 : i64} {
  func.func @kernel(%arg0: i32, %arg1: i32, %arg2: memref<16x128xf32, #tpu.memory_space<vmem>>, %arg3: memref<8x128xf32, #tpu.memory_space<vmem>>, %arg4: memref<8x128xf32, #tpu.memory_space<vmem>>) attributes {dimension_semantics = [#tpu.dimension_semantics<parallel>, #tpu.dimension_semantics<arbitrary>], iteration_bounds = array<i64: 1, 1>, scalar_prefetch = 0 : i64, scratch_operands = 0 : i64, tpu.core_type = #tpu.core_type<tc>, window_params = [{transform_indices = @transform_0, window_bounds = array<i64: 16, 128>}, {transform_indices = @transform_1, window_bounds = array<i64: 8, 128>}, {transform_indices = @transform_2, window_bounds = array<i64: 8, 128>}]} {
    %c0_i32 = arith.constant 0 : i32
    %0 = arith.cmpi eq, %arg1, %c0_i32 : i32
    %1 = arith.extui %0 : i1 to i32
    %c0_i32_0 = arith.constant 0 : i32
    %2 = arith.cmpi ne, %1, %c0_i32_0 : i32
    scf.if %2 {
      %cst_10 = arith.constant 0.000000e+00 : f32
      %21 = vector.broadcast %cst_10 : f32 to vector<8x128xf32>
      %c0_11 = arith.constant 0 : index
      %c0_12 = arith.constant 0 : index
      %22 = vector.load %arg3[%c0_11, %c0_12] : memref<8x128xf32, #tpu.memory_space<vmem>>, vector<8x128xf32>
      tpu.vector_store %arg3[%c0_11, %c0_12], %21 {strides = array<i32>} : memref<8x128xf32, #tpu.memory_space<vmem>>, vector<8x128xf32>,
      %cst_13 = arith.constant 0.000000e+00 : f32
      %23 = vector.broadcast %cst_13 : f32 to vector<8x128xf32>
      %c0_14 = arith.constant 0 : index
      %c0_15 = arith.constant 0 : index
      %24 = vector.load %arg4[%c0_14, %c0_15] : memref<8x128xf32, #tpu.memory_space<vmem>>, vector<8x128xf32>
      tpu.vector_store %arg4[%c0_14, %c0_15], %23 {strides = array<i32>} : memref<8x128xf32, #tpu.memory_space<vmem>>, vector<8x128xf32>,
    } else {
    }
    %cst = arith.constant 0.000000e+00 : f32
    %3 = vector.broadcast %cst : f32 to vector<8x128xf32>
    %c0 = arith.constant 0 : index
    %c0_1 = arith.constant 0 : index
    %4 = vector.load %arg2[%c0, %c0_1] : memref<16x128xf32, #tpu.memory_space<vmem>>, vector<16x128xf32>
    %5 = math.absf %4 : vector<16x128xf32>
    %6 = vector.extract_strided_slice %5 {offsets = [0, 0], sizes = [8, 128], strides = [1, 1]} : vector<16x128xf32> to vector<8x128xf32>
    %7 = vector.extract_strided_slice %5 {offsets = [8, 0], sizes = [8, 128], strides = [1, 1]} : vector<16x128xf32> to vector<8x128xf32>
    %8 = arith.addf %6, %7 : vector<8x128xf32>
    %9 = arith.mulf %4, %4 : vector<16x128xf32>
    %10 = vector.extract_strided_slice %9 {offsets = [0, 0], sizes = [8, 128], strides = [1, 1]} : vector<16x128xf32> to vector<8x128xf32>
    %11 = vector.extract_strided_slice %9 {offsets = [8, 0], sizes = [8, 128], strides = [1, 1]} : vector<16x128xf32> to vector<8x128xf32>
    %12 = arith.addf %10, %11 : vector<8x128xf32>
    %13 = arith.addf %3, %8 : vector<8x128xf32>
    %14 = arith.addf %3, %12 : vector<8x128xf32>
    %c0_2 = arith.constant 0 : index
    %c0_3 = arith.constant 0 : index
    %15 = vector.load %arg3[%c0_2, %c0_3] : memref<8x128xf32, #tpu.memory_space<vmem>>, vector<8x128xf32>
    %16 = arith.addf %15, %13 : vector<8x128xf32>
    %c0_4 = arith.constant 0 : index
    %c0_5 = arith.constant 0 : index
    %17 = vector.load %arg3[%c0_4, %c0_5] : memref<8x128xf32, #tpu.memory_space<vmem>>, vector<8x128xf32>
    tpu.vector_store %arg3[%c0_4, %c0_5], %16 {strides = array<i32>} : memref<8x128xf32, #tpu.memory_space<vmem>>, vector<8x128xf32>,
    %c0_6 = arith.constant 0 : index
    %c0_7 = arith.constant 0 : index
    %18 = vector.load %arg4[%c0_6, %c0_7] : memref<8x128xf32, #tpu.memory_space<vmem>>, vector<8x128xf32>
    %19 = arith.addf %18, %14 : vector<8x128xf32>
    %c0_8 = arith.constant 0 : index
    %c0_9 = arith.constant 0 : index
    %20 = vector.load %arg4[%c0_8, %c0_9] : memref<8x128xf32, #tpu.memory_space<vmem>>, vector<8x128xf32>
    tpu.vector_store %arg4[%c0_8, %c0_9], %19 {strides = array<i32>} : memref<8x128xf32, #tpu.memory_space<vmem>>, vector<8x128xf32>,
    return
  }
  func.func @transform_0(%arg0: i32, %arg1: i32) -> (i32, i32) {
    %c1_i32 = arith.constant 1 : i32
    %0 = arith.muli %arg0, %c1_i32 : i32
    %1 = arith.addi %0, %arg1 : i32
    %c0_i32 = arith.constant 0 : i32
    %2 = arith.minsi %1, %c0_i32 : i32
    %c0_i32_0 = arith.constant 0 : i32
    %c0_i32_1 = arith.constant 0 : i32
    return %2, %c0_i32_0 : i32, i32
  }
  func.func @transform_1(%arg0: i32, %arg1: i32) -> (i32, i32) {
    %c0_i32 = arith.constant 0 : i32
    %c0_i32_0 = arith.constant 0 : i32
    return %c0_i32, %arg0 : i32, i32
  }
  func.func @transform_2(%arg0: i32, %arg1: i32) -> (i32, i32) {
    %c0_i32 = arith.constant 0 : i32
    %c0_i32_0 = arith.constant 0 : i32
    return %c0_i32, %arg0 : i32, i32
  }
}

</mosaic_0001>

<llo_original>
// kernel: _regular_forward.1
$region0: #{_regular_forward.1}
  #allocation0 [shape = 'u32[]', space=smem, size = 0x4, offset = 0x4, fixed_abs, tag = 'smem constant byte address 0x4 - core index']
  #allocation1 [shape = 'u32[144,128]{1,0:T(1,128)}', space=vmem, size = 0x12000, scoped, tag = 'internal scratch']
  %s0 = inlined_call_operand.vmem [shape: f32[16,128], index: 0, kind: input, shape index: {}]
  %s1 = inlined_call_operand.vmem [shape: f32[8,128], index: 1, kind: output, shape index: {0}]
  %s2 = inlined_call_operand.vmem [shape: f32[8,128], index: 2, kind: output, shape index: {1}]
  %3 = xla_tuple %s1, %s2
  %s4 = sld [smem:[#allocation0]]
  $region26: #{_regular_forward.1} parent=0
    _
  %s6 = ssub.s32 1, %s4
  %s7 = scalar_select 0, %s6, %s4
  // Predicated region
  $region2: #{_regular_forward.1} parent=0 // pred_check
    _
  $region3: #{_regular_forward.1} parent=0 // pred_check_branch
    %9 = sbr.rel (0) target = $region5
  $region4: #{_regular_forward.1} parent=0 // pred_region
    %s10 = sadd.s32 0, 0
    %p11 = scmp.lt.s32.totalorder %s10, 0
    %s12 = scalar_select %p11, %s10, 0
    %s13 = smul.u32 2, %s12
    %p14 = scmp.lt.s32.totalorder %s13, 1
    %s15 = scalar_select %p14, %s13, 1
    %s16 = smul.addr %s15, 8
    %s17 = scalar_lea.vmem %s0, %s16
    %s18 = sadd.s32 0, 0
    %p19 = scmp.lt.s32.totalorder %s18, 0
    %s20 = scalar_select %p19, %s18, 0
    %s21 = smul.u32 2, %s20
  $region5: #{_regular_forward.1} parent=0 // pred_fallthru
    _
  %s22 = sadd.s32 0, 0
  %p23 = scmp.lt.s32.totalorder %s22, 0
  %s24 = scalar_select %p23, %s22, 0
  %s25 = smul.u32 2, %s24
  %p26 = scmp.lt.s32.totalorder %s25, 1
  %s27 = scalar_select %p26, %s25, 1
  %s28 = smul.addr %s27, 8
  %s29 = scalar_lea.vmem %s0, %s28
  %s30 = sadd.s32 0, 0
  %p31 = scmp.lt.s32.totalorder %s30, 0
  %s32 = scalar_select %p31, %s30, 0
  %s33 = smul.u32 2, %s32
  %p34 = scmp.lt.s32.totalorder %s33, 1
  %s35 = scalar_select %p34, %s33, 1
  %s36 = smul.addr %s35, 8
  %s37 = scalar_lea.vmem %s0, %s36
  %s38 = sadd.s32 0, 0
  %p39 = scmp.lt.s32.totalorder %s38, 0
  %s40 = scalar_select %p39, %s38, 0
  %s41 = smul.u32 2, %s40
  %p42 = scmp.eq.s32.totalorder 0, 0
  // Predicated region
  $region6: #{_regular_forward.1} parent=0 // pred_check
    %p43 = pneg %p42
  $region7: #{_regular_forward.1} parent=0 // pred_check_branch
    %45 = sbr.rel (%p43) target = $region9
  $region8: #{_regular_forward.1} parent=0 // pred_region
    %46 = vst [vmem:[%s1] sm:$0xff] 0.0
    %47 = vst [vmem:[%s2] sm:$0xff] 0.0
  $region9: #{_regular_forward.1} parent=0 // pred_fallthru
    _
  %v48 = vld [vmem:[%s37] sm:$0xff]
  %v49 = vld [vmem:[%s37 + $0x8] sm:$0xff]
  %v50 = vand.u32 2147483647, %v48
  %v51 = vand.u32 2147483647, %v49
  %v52 = vadd.f32 %v50, %v51
  %v53 = vmul.f32 %v48, %v48
  %v54 = vmul.f32 %v49, %v49
  %v55 = vadd.f32 %v53, %v54
  %v56 = vadd.f32 %v52, 0.0
  %v57 = vadd.f32 %v55, 0.0
  %v58 = vld [vmem:[%s1] sm:$0xff]
  %v59 = vadd.f32 %v58, %v56
  %60 = vst [vmem:[%s1] sm:$0xff] %v59
  %v61 = vld [vmem:[%s2] sm:$0xff]
  %v62 = vadd.f32 %v61, %v57
  %63 = vst [vmem:[%s2] sm:$0xff] %v62
  // Predicated region
  $region10: #{_regular_forward.1} parent=0 // pred_check
    _
  $region11: #{_regular_forward.1} parent=0 // pred_check_branch
    %65 = sbr.rel (0) target = $region13
  $region12: #{_regular_forward.1} parent=0 // pred_region
    _
  $region13: #{_regular_forward.1} parent=0 // pred_fallthru
    _
  // Predicated region
  $region14: #{_regular_forward.1} parent=0 // pred_check
    _
  $region15: #{_regular_forward.1} parent=0 // pred_check_branch
    %67 = sbr.rel (0) target = $region17
  $region16: #{_regular_forward.1} parent=0 // pred_region
    _
  $region17: #{_regular_forward.1} parent=0 // pred_fallthru
    _
  // Predicated region
  $region18: #{_regular_forward.1} parent=0 // pred_check
    _
  $region19: #{_regular_forward.1} parent=0 // pred_check_branch
    %69 = sbr.rel (0) target = $region21
  $region20: #{_regular_forward.1} parent=0 // pred_region
    _
  $region21: #{_regular_forward.1} parent=0 // pred_fallthru
    _
  // Predicated region
  $region22: #{_regular_forward.1} parent=0 // pred_check
    _
  $region23: #{_regular_forward.1} parent=0 // pred_check_branch
    %71 = sbr.rel (0) target = $region25
  $region24: #{_regular_forward.1} parent=0 // pred_region
    _
  $region25: #{_regular_forward.1} parent=0 // pred_fallthru
    _

</llo_original>
